<compile_context>
chip_gen: v5e
topology: v5e:2x2
jax: 0.10.0
libtpu: 0.0.40
codegen_flags: <defaults>
</compile_context>

<pallas_src>
import jax
import jax.numpy as jnp
from jax.experimental import pallas as pl
from jax.experimental.pallas import tpu as pltpu

NEG_SLOPE = 0.01                      # torch.nn.LeakyReLU default
BN_EPS = 1e-5                         # torch.nn.BatchNorm2d default
VMEM_LIMIT_BYTES = 32 * 1024 * 1024   # safe on v5e/v6e (128 MiB) and v7x (64 MiB)
TILE_BYTE_BUDGET = 4 << 20            # ~4 MiB of live tile data per grid step


def _pick_tile(total, bytes_per_row, max_rows):
    """Largest multiple-of-8 divisor of `total` within the row/byte budget."""
    cap = min(total, max_rows, max(8, TILE_BYTE_BUDGET // max(bytes_per_row, 1)))
    best = 0
    t = 8
    while t <= cap:
        if total % t == 0:
            best = t
        t += 8
    return best if best > 0 else total


def _coerce_tile(total, requested):
    if requested is not None and requested % 8 == 0 and total % requested == 0:
        return requested
    return None


# ----------------------------------------------------------------------------
# Kernels
# ----------------------------------------------------------------------------
def _hanc_conv_stats_kernel(xq_ref, w_orig_ref, w_pool_ref,
                            y_ref, sum_ref, ssq_ref):
    # xq_ref : (4, TP, Cin) -- axis 0 enumerates the 4 pixels of each 2x2 block
    # w_orig : (Cin, Cout)   w_pool : (2*Cin, Cout) with rows [avg-w ; max-w]
    # y_ref  : (4, TP, Cout) sum_ref/ssq_ref : (1, Cout) resident accumulators
    i = pl.program_id(0)

    x = xq_ref[...]
    q4, tp, cin = x.shape
    x0, x1, x2, x3 = x[0], x[1], x[2], x[3]
    avg = (x0 + x1 + x2 + x3) * 0.25
    mx = jnp.maximum(jnp.maximum(x0, x1), jnp.maximum(x2, x3))

    # fused per-pixel 1x1 conv: one (4*TP, Cin) @ (Cin, Cout) MXU matmul
    y_pix = jnp.dot(x.reshape(q4 * tp, cin), w_orig_ref[...],
                    preferred_element_type=jnp.float32)
    cout = y_pix.shape[-1]

    # fused pooled 1x1 conv: one (TP, 2*Cin) @ (2*Cin, Cout) matmul; the
    # nearest 2x upsample means the pooled row feeds all 4 block pixels.
    pooled = jnp.concatenate([avg, mx], axis=-1)
    y_pool = jnp.dot(pooled, w_pool_ref[...],
                     preferred_element_type=jnp.float32)

    y = y_pix.reshape(q4, tp, cout) + y_pool[None, :, :]
    y_ref[...] = y.astype(y_ref.dtype)

    # single-pass per-channel moments for BatchNorm
    ts = jnp.sum(jnp.sum(y, axis=0), axis=0, keepdims=True)           # (1, Cout)
    tq = jnp.sum(jnp.sum(y * y, axis=0), axis=0, keepdims=True)       # (1, Cout)

    @pl.when(i == 0)
    def _():
        sum_ref[...] = jnp.zeros_like(sum_ref)
        ssq_ref[...] = jnp.zeros_like(ssq_ref)

    sum_ref[...] += ts
    ssq_ref[...] += tq


def _conv_stats_kernel(x_ref, w_ref, y_ref, sum_ref, ssq_ref):
    # x_ref: (TM, Cin)  w_ref: (Cin, Cout)  -> y_ref: (TM, Cout)
    i = pl.program_id(0)
    y = jnp.dot(x_ref[...], w_ref[...], preferred_element_type=jnp.float32)
    y_ref[...] = y.astype(y_ref.dtype)

    ts = jnp.sum(y, axis=0, keepdims=True)
    tq = jnp.sum(y * y, axis=0, keepdims=True)

    @pl.when(i == 0)
    def _():
        sum_ref[...] = jnp.zeros_like(sum_ref)
        ssq_ref[...] = jnp.zeros_like(ssq_ref)

    sum_ref[...] += ts
    ssq_ref[...] += tq


def _affine_act_kernel(y_ref, scale_ref, shift_ref, out_ref):
    # fused BatchNorm (folded scale/shift) + LeakyReLU(0.01)
    z = y_ref[...].astype(jnp.float32) * scale_ref[...] + shift_ref[...]
    out_ref[...] = jnp.maximum(z, NEG_SLOPE * z).astype(out_ref.dtype)


# ----------------------------------------------------------------------------
# Host wrappers
# ----------------------------------------------------------------------------
def _bn_fold(total_sum, total_ssq, count, gamma, beta):
    """Fold batch moments + BN affine into per-channel scale/shift (f32)."""
    mean = total_sum / count
    var = jnp.maximum(total_ssq / count - mean * mean, 0.0)   # biased variance
    inv_std = jax.lax.rsqrt(var + BN_EPS)
    scale = gamma.reshape(1, -1).astype(jnp.float32) * inv_std
    shift = beta.reshape(1, -1).astype(jnp.float32) - mean * scale
    return scale, shift


def _apply_bn_act(y2d, scale, shift, out_dtype, tile_rows):
    n_rows, cout = y2d.shape
    row_bytes = cout * (jnp.dtype(y2d.dtype).itemsize
                        + jnp.dtype(out_dtype).itemsize)
    tn = _coerce_tile(n_rows, tile_rows) or _pick_tile(n_rows, row_bytes, 2048)
    return pl.pallas_call(
        _affine_act_kernel,
        out_shape=jax.ShapeDtypeStruct((n_rows, cout), out_dtype),
        grid=(n_rows // tn,),
        in_specs=[pl.BlockSpec((tn, cout), lambda i: (i, 0)),
                  pl.BlockSpec((1, cout), lambda i: (0, 0)),
                  pl.BlockSpec((1, cout), lambda i: (0, 0))],
        out_specs=pl.BlockSpec((tn, cout), lambda i: (i, 0)),
        compiler_params=pltpu.CompilerParams(
            dimension_semantics=("parallel",),
            vmem_limit_bytes=VMEM_LIMIT_BYTES),
    )(y2d, scale, shift)


def hanc_layer(x_nchw, params, *, tile_rows=None):
    """Pallas implementation of HANCLayer.forward (input NCHW, output NCHW).

    tile_rows: optional tile-size override (used in tests to force multi-tile
    grids); must be a multiple of 8 that divides the spatial extent.
    """
    B, C, H, W = x_nchw.shape
    cdt = x_nchw.dtype
    gamma = params["gamma"]
    beta = params["beta"]

    if H > 14:
        H2, W2 = H // 2, W // 2
        P = B * H2 * W2
        N = 4 * P
        # (B,C,H,W) -> (dy,dx,B,H2,W2,C) -> (4, P, C): one host transpose in.
        xq = jnp.transpose(x_nchw.reshape(B, C, H2, 2, W2, 2),
                           (3, 5, 0, 2, 4, 1)).reshape(4, P, C)

        w = params["w_cnv"].astype(cdt)                     # (Cout, 3*C)
        Cout = w.shape[0]
        w_orig = jnp.transpose(w[:, :C])                    # (C, Cout)
        w_pool = jnp.transpose(w[:, C:])                    # (2C, Cout) = [avg; max]
        # conv bias intentionally dropped: training-mode BN cancels it exactly.

        itm = jnp.dtype(cdt).itemsize
        row_bytes = 4 * (C + Cout) * itm
        tp = _coerce_tile(P, tile_rows) or _pick_tile(P, row_bytes, 512)

        y, s, ssq = pl.pallas_call(
            _hanc_conv_stats_kernel,
            out_shape=(jax.ShapeDtypeStruct((4, P, Cout), cdt),
                       jax.ShapeDtypeStruct((1, Cout), jnp.float32),
                       jax.ShapeDtypeStruct((1, Cout), jnp.float32)),
            grid=(P // tp,),
            in_specs=[pl.BlockSpec((4, tp, C), lambda i: (0, i, 0)),
                      pl.BlockSpec((C, Cout), lambda i: (0, 0)),
                      pl.BlockSpec((2 * C, Cout), lambda i: (0, 0))],
            out_specs=(pl.BlockSpec((4, tp, Cout), lambda i: (0, i, 0)),
                       pl.BlockSpec((1, Cout), lambda i: (0, 0)),
                       pl.BlockSpec((1, Cout), lambda i: (0, 0))),
            compiler_params=pltpu.CompilerParams(
                dimension_semantics=("arbitrary",),
                vmem_limit_bytes=VMEM_LIMIT_BYTES),
        )(xq, w_orig, w_pool)

        scale, shift = _bn_fold(s, ssq, float(N), gamma, beta)
        out2d = _apply_bn_act(y.reshape(N, Cout), scale, shift, cdt, tile_rows)

        # (4P, Cout) -> (dy,dx,B,H2,W2,Cout) -> NCHW: one host transpose out.
        out = out2d.reshape(2, 2, B, H2, W2, Cout)
        out = jnp.transpose(out, (2, 5, 3, 0, 4, 1)).reshape(B, Cout, H, W)
        return out
    else:
        M = B * H * W
        xf = jnp.transpose(x_nchw, (0, 2, 3, 1)).reshape(M, C)
        w1 = params["w_cnv1"].astype(cdt)                   # (Cout, C)
        Cout = w1.shape[0]
        # conv bias intentionally dropped: training-mode BN cancels it exactly.

        itm = jnp.dtype(cdt).itemsize
        row_bytes = (C + Cout) * itm
        tm = _coerce_tile(M, tile_rows) or _pick_tile(M, row_bytes, 2048)

        y, s, ssq = pl.pallas_call(
            _conv_stats_kernel,
            out_shape=(jax.ShapeDtypeStruct((M, Cout), cdt),
                       jax.ShapeDtypeStruct((1, Cout), jnp.float32),
                       jax.ShapeDtypeStruct((1, Cout), jnp.float32)),
            grid=(M // tm,),
            in_specs=[pl.BlockSpec((tm, C), lambda i: (i, 0)),
                      pl.BlockSpec((C, Cout), lambda i: (0, 0))],
            out_specs=(pl.BlockSpec((tm, Cout), lambda i: (i, 0)),
                       pl.BlockSpec((1, Cout), lambda i: (0, 0)),
                       pl.BlockSpec((1, Cout), lambda i: (0, 0))),
            compiler_params=pltpu.CompilerParams(
                dimension_semantics=("arbitrary",),
                vmem_limit_bytes=VMEM_LIMIT_BYTES),
        )(xf, jnp.transpose(w1))

        scale, shift = _bn_fold(s, ssq, float(M), gamma, beta)
        out2d = _apply_bn_act(y, scale, shift, cdt, tile_rows)
        out = out2d.reshape(B, H, W, Cout)
        return jnp.transpose(out, (0, 3, 1, 2))


# ----------------------------------------------------------------------------
# Pure-jnp reference mirroring the PyTorch forward (for verification)
# ----------------------------------------------------------------------------
def hanc_layer_ref(x, params):
    B, C, H, W = x.shape
    if H > 14:
        xr = x.reshape(B, C, H // 2, 2, W // 2, 2)
        avg = xr.mean(axis=(3, 5))
        mx = xr.max(axis=(3, 5))
        up = lambda p: jnp.repeat(jnp.repeat(p, 2, axis=2), 2, axis=3)
        xc = jnp.concatenate([x, up(avg), up(mx)], axis=1)
        y = (jnp.einsum('oc,bchw->bohw', params["w_cnv"], xc)
             + params["b_cnv"][None, :, None, None])
    else:
        y = (jnp.einsum('oc,bchw->bohw', params["w_cnv1"], x)
             + params["b_cnv1"][None, :, None, None])
    mean = y.mean(axis=(0, 2, 3), keepdims=True)
    var = ((y - mean) ** 2).mean(axis=(0, 2, 3), keepdims=True)
    z = ((y - mean) / jnp.sqrt(var + BN_EPS)
         * params["gamma"][None, :, None, None]
         + params["beta"][None, :, None, None])
    return jnp.where(z >= 0, z, NEG_SLOPE * z)


if __name__ == "__main__":
    key = jax.random.PRNGKey(0)
    B, Cin, H, W = 2, 4, 16, 16
    Cout = 8
    k1, k2, k3, k4, kx = jax.random.split(key, 5)
    params = {
        "w_cnv": 0.1 * jax.random.normal(k1, (Cout, 3 * Cin), jnp.float32),
        "b_cnv": 0.1 * jax.random.normal(k2, (Cout,), jnp.float32),
        "w_cnv1": 0.1 * jax.random.normal(k3, (Cout, Cin), jnp.float32),
        "b_cnv1": 0.1 * jax.random.normal(k4, (Cout,), jnp.float32),
        "gamma": jnp.ones((Cout,), jnp.float32),   # BatchNorm2d default weight
        "beta": jnp.zeros((Cout,), jnp.float32),   # BatchNorm2d default bias
    }

    # main branch: H > 14 (HANC aggregation path), auto tile (single grid step)
    x = jax.random.normal(kx, (B, Cin, H, W), jnp.float32)
    out = jax.block_until_ready(hanc_layer(x, params))
    ref = hanc_layer_ref(x, params)
    assert out.shape == (B, Cout, H, W)
    assert jnp.allclose(out, ref, atol=1e-3, rtol=1e-3), \
        float(jnp.max(jnp.abs(out - ref)))

    # same branch with a forced small tile to exercise the multi-step
    # accumulator (two-pass BN) path of the grid
    out_t = jax.block_until_ready(hanc_layer(x, params, tile_rows=32))
    assert jnp.allclose(out_t, ref, atol=1e-3, rtol=1e-3), \
        float(jnp.max(jnp.abs(out_t - ref)))

    # small-spatial branch: H <= 14 (plain 1x1 conv path)
    x_small = jax.random.normal(kx, (B, Cin, 8, 8), jnp.float32)
    out_s = jax.block_until_ready(hanc_layer(x_small, params))
    ref_s = hanc_layer_ref(x_small, params)
    assert jnp.allclose(out_s, ref_s, atol=1e-3, rtol=1e-3), \
        float(jnp.max(jnp.abs(out_s - ref_s)))

    print("KERNEL_OK")
</pallas_src>

<mosaic_0001>
module attributes {stable_mosaic.version = 11 : i64} {
  func.func @_hanc_conv_stats_kernel(%arg0: i32, %arg1: memref<4x128x4xf32, #tpu.memory_space<vmem>>, %arg2: memref<4x8xf32, #tpu.memory_space<vmem>>, %arg3: memref<8x8xf32, #tpu.memory_space<vmem>>, %arg4: memref<4x128x8xf32, #tpu.memory_space<vmem>>, %arg5: memref<1x8xf32, #tpu.memory_space<vmem>>, %arg6: memref<1x8xf32, #tpu.memory_space<vmem>>) attributes {dimension_semantics = [#tpu.dimension_semantics<arbitrary>], iteration_bounds = array<i64: 1>, scalar_prefetch = 0 : i64, scratch_operands = 0 : i64, tpu.core_type = #tpu.core_type<tc>, window_params = [{transform_indices = @transform_0, window_bounds = array<i64: 4, 128, 4>}, {pipeline_mode = #tpu.pipeline_mode<synchronous>, transform_indices = @transform_1, window_bounds = array<i64: 4, 8>}, {pipeline_mode = #tpu.pipeline_mode<synchronous>, transform_indices = @transform_2, window_bounds = array<i64: 8, 8>}, {transform_indices = @transform_3, window_bounds = array<i64: 4, 128, 8>}, {pipeline_mode = #tpu.pipeline_mode<synchronous>, transform_indices = @transform_4, window_bounds = array<i64: 1, 8>}, {pipeline_mode = #tpu.pipeline_mode<synchronous>, transform_indices = @transform_5, window_bounds = array<i64: 1, 8>}]} {
    %c0 = arith.constant 0 : index
    %c0_0 = arith.constant 0 : index
    %c0_1 = arith.constant 0 : index
    %0 = vector.load %arg1[%c0, %c0_0, %c0_1] : memref<4x128x4xf32, #tpu.memory_space<vmem>>, vector<4x128x4xf32>
    %1 = vector.extract_strided_slice %0 {offsets = [0, 0, 0], sizes = [1, 128, 4], strides = [1, 1, 1]} : vector<4x128x4xf32> to vector<1x128x4xf32>
    %2 = vector.shape_cast %1 : vector<1x128x4xf32> to vector<128x4xf32>
    %3 = vector.extract_strided_slice %0 {offsets = [1, 0, 0], sizes = [1, 128, 4], strides = [1, 1, 1]} : vector<4x128x4xf32> to vector<1x128x4xf32>
    %4 = vector.shape_cast %3 : vector<1x128x4xf32> to vector<128x4xf32>
    %5 = vector.extract_strided_slice %0 {offsets = [2, 0, 0], sizes = [1, 128, 4], strides = [1, 1, 1]} : vector<4x128x4xf32> to vector<1x128x4xf32>
    %6 = vector.shape_cast %5 : vector<1x128x4xf32> to vector<128x4xf32>
    %7 = vector.extract_strided_slice %0 {offsets = [3, 0, 0], sizes = [1, 128, 4], strides = [1, 1, 1]} : vector<4x128x4xf32> to vector<1x128x4xf32>
    %8 = vector.shape_cast %7 : vector<1x128x4xf32> to vector<128x4xf32>
    %9 = arith.addf %2, %4 : vector<128x4xf32>
    %10 = arith.addf %9, %6 : vector<128x4xf32>
    %11 = arith.addf %10, %8 : vector<128x4xf32>
    %cst = arith.constant 2.500000e-01 : f32
    %12 = vector.broadcast %cst : f32 to vector<128x4xf32>
    %13 = arith.mulf %11, %12 : vector<128x4xf32>
    %14 = arith.maximumf %2, %4 : vector<128x4xf32>
    %15 = arith.maximumf %6, %8 : vector<128x4xf32>
    %16 = arith.maximumf %14, %15 : vector<128x4xf32>
    %17 = vector.shape_cast %0 : vector<4x128x4xf32> to vector<512x4xf32>
    %c0_2 = arith.constant 0 : index
    %c0_3 = arith.constant 0 : index
    %18 = vector.load %arg2[%c0_2, %c0_3] : memref<4x8xf32, #tpu.memory_space<vmem>>, vector<4x8xf32>
    %cst_4 = arith.constant dense<0.000000e+00> : vector<512x8xf32>
    %19 = tpu.matmul %17, %18, %cst_4 {dimension_numbers = #tpu.dot_dimension_numbers<[1], [0], [0], [1], [0, 0, 1, 1], [], []>} : vector<512x4xf32>, vector<4x8xf32>, vector<512x8xf32> -> vector<512x8xf32>
    %20 = tpu.concatenate %13, %16 in 1 : vector<128x4xf32>, vector<128x4xf32> -> vector<128x8xf32>
    %c0_5 = arith.constant 0 : index
    %c0_6 = arith.constant 0 : index
    %21 = vector.load %arg3[%c0_5, %c0_6] : memref<8x8xf32, #tpu.memory_space<vmem>>, vector<8x8xf32>
    %cst_7 = arith.constant dense<0.000000e+00> : vector<128x8xf32>
    %22 = tpu.matmul %20, %21, %cst_7 {dimension_numbers = #tpu.dot_dimension_numbers<[1], [0], [0], [1], [0, 0, 1, 1], [], []>} : vector<128x8xf32>, vector<8x8xf32>, vector<128x8xf32> -> vector<128x8xf32>
    %23 = vector.shape_cast %19 : vector<512x8xf32> to vector<4x128x8xf32>
    %24 = vector.shape_cast %22 : vector<128x8xf32> to vector<1x128x8xf32>
    %25 = vector.broadcast %24 : vector<1x128x8xf32> to vector<4x128x8xf32>
    %26 = arith.addf %23, %25 : vector<4x128x8xf32>
    %c0_8 = arith.constant 0 : index
    %c0_9 = arith.constant 0 : index
    %c0_10 = arith.constant 0 : index
    %27 = vector.load %arg4[%c0_8, %c0_9, %c0_10] : memref<4x128x8xf32, #tpu.memory_space<vmem>>, vector<4x128x8xf32>
    tpu.vector_store %arg4[%c0_8, %c0_9, %c0_10], %26 {strides = array<i32>} : memref<4x128x8xf32, #tpu.memory_space<vmem>>, vector<4x128x8xf32>,
    %cst_11 = arith.constant dense<0.000000e+00> : vector<128x8xf32>
    %28 = vector.multi_reduction <add>, %26, %cst_11 [0] : vector<4x128x8xf32> to vector<128x8xf32>
    %cst_12 = arith.constant dense<0.000000e+00> : vector<8xf32>
    %29 = vector.multi_reduction <add>, %28, %cst_12 [0] : vector<128x8xf32> to vector<8xf32>
    %30 = vector.shape_cast %29 : vector<8xf32> to vector<1x8xf32>
    %31 = arith.mulf %26, %26 : vector<4x128x8xf32>
    %cst_13 = arith.constant dense<0.000000e+00> : vector<128x8xf32>
    %32 = vector.multi_reduction <add>, %31, %cst_13 [0] : vector<4x128x8xf32> to vector<128x8xf32>
    %cst_14 = arith.constant dense<0.000000e+00> : vector<8xf32>
    %33 = vector.multi_reduction <add>, %32, %cst_14 [0] : vector<128x8xf32> to vector<8xf32>
    %34 = vector.shape_cast %33 : vector<8xf32> to vector<1x8xf32>
    %c0_i32 = arith.constant 0 : i32
    %35 = arith.cmpi eq, %arg0, %c0_i32 : i32
    %36 = arith.extui %35 : i1 to i32
    %c0_i32_15 = arith.constant 0 : i32
    %37 = arith.cmpi ne, %36, %c0_i32_15 : i32
    scf.if %37 {
      %cst_24 = arith.constant 0.000000e+00 : f32
      %44 = vector.broadcast %cst_24 : f32 to vector<1x8xf32>
      %c0_25 = arith.constant 0 : index
      %c0_26 = arith.constant 0 : index
      %45 = vector.load %arg5[%c0_25, %c0_26] : memref<1x8xf32, #tpu.memory_space<vmem>>, vector<1x8xf32>
      tpu.vector_store %arg5[%c0_25, %c0_26], %44 {strides = array<i32>} : memref<1x8xf32, #tpu.memory_space<vmem>>, vector<1x8xf32>,
      %cst_27 = arith.constant 0.000000e+00 : f32
      %46 = vector.broadcast %cst_27 : f32 to vector<1x8xf32>
      %c0_28 = arith.constant 0 : index
      %c0_29 = arith.constant 0 : index
      %47 = vector.load %arg6[%c0_28, %c0_29] : memref<1x8xf32, #tpu.memory_space<vmem>>, vector<1x8xf32>
      tpu.vector_store %arg6[%c0_28, %c0_29], %46 {strides = array<i32>} : memref<1x8xf32, #tpu.memory_space<vmem>>, vector<1x8xf32>,
    } else {
    }
    %c0_16 = arith.constant 0 : index
    %c0_17 = arith.constant 0 : index
    %38 = vector.load %arg5[%c0_16, %c0_17] : memref<1x8xf32, #tpu.memory_space<vmem>>, vector<1x8xf32>
    %39 = arith.addf %38, %30 : vector<1x8xf32>
    %c0_18 = arith.constant 0 : index
    %c0_19 = arith.constant 0 : index
    %40 = vector.load %arg5[%c0_18, %c0_19] : memref<1x8xf32, #tpu.memory_space<vmem>>, vector<1x8xf32>
    tpu.vector_store %arg5[%c0_18, %c0_19], %39 {strides = array<i32>} : memref<1x8xf32, #tpu.memory_space<vmem>>, vector<1x8xf32>,
    %c0_20 = arith.constant 0 : index
    %c0_21 = arith.constant 0 : index
    %41 = vector.load %arg6[%c0_20, %c0_21] : memref<1x8xf32, #tpu.memory_space<vmem>>, vector<1x8xf32>
    %42 = arith.addf %41, %34 : vector<1x8xf32>
    %c0_22 = arith.constant 0 : index
    %c0_23 = arith.constant 0 : index
    %43 = vector.load %arg6[%c0_22, %c0_23] : memref<1x8xf32, #tpu.memory_space<vmem>>, vector<1x8xf32>
    tpu.vector_store %arg6[%c0_22, %c0_23], %42 {strides = array<i32>} : memref<1x8xf32, #tpu.memory_space<vmem>>, vector<1x8xf32>,
    return
  }
  func.func @transform_0(%arg0: i32) -> (i32, i32, i32) {
    %c0_i32 = arith.constant 0 : i32
    %c0_i32_0 = arith.constant 0 : i32
    %c0_i32_1 = arith.constant 0 : i32
    return %c0_i32, %arg0, %c0_i32_0 : i32, i32, i32
  }
  func.func @transform_1(%arg0: i32) -> (i32, i32) {
    %c0_i32 = arith.constant 0 : i32
    %c0_i32_0 = arith.constant 0 : i32
    %c0_i32_1 = arith.constant 0 : i32
    return %c0_i32, %c0_i32_0 : i32, i32
  }
  func.func @transform_2(%arg0: i32) -> (i32, i32) {
    %c0_i32 = arith.constant 0 : i32
    %c0_i32_0 = arith.constant 0 : i32
    %c0_i32_1 = arith.constant 0 : i32
    return %c0_i32, %c0_i32_0 : i32, i32
  }
  func.func @transform_3(%arg0: i32) -> (i32, i32, i32) {
    %c0_i32 = arith.constant 0 : i32
    %c0_i32_0 = arith.constant 0 : i32
    %c0_i32_1 = arith.constant 0 : i32
    return %c0_i32, %arg0, %c0_i32_0 : i32, i32, i32
  }
  func.func @transform_4(%arg0: i32) -> (i32, i32) {
    %c0_i32 = arith.constant 0 : i32
    %c0_i32_0 = arith.constant 0 : i32
    %c0_i32_1 = arith.constant 0 : i32
    return %c0_i32, %c0_i32_0 : i32, i32
  }
  func.func @transform_5(%arg0: i32) -> (i32, i32) {
    %c0_i32 = arith.constant 0 : i32
    %c0_i32_0 = arith.constant 0 : i32
    %c0_i32_1 = arith.constant 0 : i32
    return %c0_i32, %c0_i32_0 : i32, i32
  }
}

</mosaic_0001>

<llo_original>
// kernel: tpu_custom_call.1
$region0: #{tpu_custom_call.1}
  #allocation0 [shape = 'u32[]', space=smem, size = 0x4, offset = 0x4, fixed_abs, tag = 'smem constant byte address 0x4 - core index']
  #allocation1 [shape = 'u32[72,128]{1,0:T(1,128)}', space=vmem, size = 0x9000, scoped, tag = 'internal scratch']
  %s0 = inlined_call_operand.vmem [shape: f32[4,128,4], index: 0, kind: input, shape index: {}]
  %s1 = inlined_call_operand.vmem [shape: f32[4,8], index: 1, kind: input, shape index: {}]
  %s2 = inlined_call_operand.vmem [shape: f32[8,8], index: 2, kind: input, shape index: {}]
  %s3 = inlined_call_operand.vmem [shape: f32[4,128,8], index: 3, kind: output, shape index: {0}]
  %s4 = inlined_call_operand.hbm [shape: f32[1,8], index: 4, kind: output, shape index: {1}]
  %s5 = inlined_call_operand.hbm [shape: f32[1,8], index: 5, kind: output, shape index: {2}]
  %6 = xla_tuple %s3, %s4, %s5
  %s7 = sld [smem:[#allocation0]]
  $region42: #{tpu_custom_call.1} parent=0
    _
  %s9 = ssub.s32 1, %s7
  %s10 = scalar_select 0, %s9, %s7
  $region1: #{tpu_custom_call.1} parent=0
    #allocation2 [shape = 'u8[512]{0}', space=vmem, size = 0x400, scoped, tag = 'output window, operand 1, single buffered']
    #allocation3 [shape = 's32[1]{0}', space=sflag, size = 0x4, scoped, tag = 'scoped memory for tpu_custom_call.1']
    #allocation4 [shape = 'u8[512]{0}', space=vmem, size = 0x400, scoped, tag = 'output window, operand 2, single buffered']
    #allocation5 [shape = 's32[1]{0}', space=sflag, size = 0x4, scoped, tag = 'scoped memory for tpu_custom_call.1']
    %11 = vsyncpa [#allocation3], 0
    %12 = vsyncpa [#allocation5], 0
    // Predicated region
    $region2: #{tpu_custom_call.1} parent=1 // pred_check
      _
    $region3: #{tpu_custom_call.1} parent=1 // pred_check_branch
      %14 = sbr.rel (0) target = $region5
    $region4: #{tpu_custom_call.1} parent=1 // pred_region
      _
    $region5: #{tpu_custom_call.1} parent=1 // pred_fallthru
      _
    // Predicated region
    $region6: #{tpu_custom_call.1} parent=1 // pred_check
      _
    $region7: #{tpu_custom_call.1} parent=1 // pred_check_branch
      %16 = sbr.rel (0) target = $region9
    $region8: #{tpu_custom_call.1} parent=1 // pred_region
      _
    $region9: #{tpu_custom_call.1} parent=1 // pred_fallthru
      _
    // Predicated region
    $region10: #{tpu_custom_call.1} parent=1 // pred_check
      _
    $region11: #{tpu_custom_call.1} parent=1 // pred_check_branch
      %18 = sbr.rel (0) target = $region13
    $region12: #{tpu_custom_call.1} parent=1 // pred_region
      _
    $region13: #{tpu_custom_call.1} parent=1 // pred_fallthru
      _
    %v19 = vld [vmem:[%s0] sm:$0xff]
    %v20 = vld [vmem:[%s0 + $0x8] sm:$0xff]
    %v21 = vld [vmem:[%s0 + $0x10] sm:$0xff]
    %v22 = vld [vmem:[%s0 + $0x18] sm:$0xff]
    %v23 = vld [vmem:[%s0 + $0x20] sm:$0xff]
    %v24 = vld [vmem:[%s0 + $0x28] sm:$0xff]
    %v25 = vld [vmem:[%s0 + $0x30] sm:$0xff]
    %v26 = vld [vmem:[%s0 + $0x38] sm:$0xff]
    %v27 = vld [vmem:[%s0 + $0x40] sm:$0xff]
    %v28 = vld [vmem:[%s0 + $0x48] sm:$0xff]
    %v29 = vld [vmem:[%s0 + $0x50] sm:$0xff]
    %v30 = vld [vmem:[%s0 + $0x58] sm:$0xff]
    %v31 = vld [vmem:[%s0 + $0x60] sm:$0xff]
    %v32 = vld [vmem:[%s0 + $0x68] sm:$0xff]
    %v33 = vld [vmem:[%s0 + $0x70] sm:$0xff]
    %v34 = vld [vmem:[%s0 + $0x78] sm:$0xff]
    %v35 = vld [vmem:[%s0 + $0x80] sm:$0xff]
    %v36 = vld [vmem:[%s0 + $0x88] sm:$0xff]
    %v37 = vld [vmem:[%s0 + $0x90] sm:$0xff]
    %v38 = vld [vmem:[%s0 + $0x98] sm:$0xff]
    %v39 = vld [vmem:[%s0 + $0xa0] sm:$0xff]
    %v40 = vld [vmem:[%s0 + $0xa8] sm:$0xff]
    %v41 = vld [vmem:[%s0 + $0xb0] sm:$0xff]
    %v42 = vld [vmem:[%s0 + $0xb8] sm:$0xff]
    %v43 = vld [vmem:[%s0 + $0xc0] sm:$0xff]
    %v44 = vld [vmem:[%s0 + $0xc8] sm:$0xff]
    %v45 = vld [vmem:[%s0 + $0xd0] sm:$0xff]
    %v46 = vld [vmem:[%s0 + $0xd8] sm:$0xff]
    %v47 = vld [vmem:[%s0 + $0xe0] sm:$0xff]
    %v48 = vld [vmem:[%s0 + $0xe8] sm:$0xff]
    %v49 = vld [vmem:[%s0 + $0xf0] sm:$0xff]
    %v50 = vld [vmem:[%s0 + $0xf8] sm:$0xff]
    %v51 = vld [vmem:[%s0 + $0x100] sm:$0xff]
    %v52 = vld [vmem:[%s0 + $0x108] sm:$0xff]
    %v53 = vld [vmem:[%s0 + $0x110] sm:$0xff]
    %v54 = vld [vmem:[%s0 + $0x118] sm:$0xff]
    %v55 = vld [vmem:[%s0 + $0x120] sm:$0xff]
    %v56 = vld [vmem:[%s0 + $0x128] sm:$0xff]
    %v57 = vld [vmem:[%s0 + $0x130] sm:$0xff]
    %v58 = vld [vmem:[%s0 + $0x138] sm:$0xff]
    %v59 = vld [vmem:[%s0 + $0x140] sm:$0xff]
    %v60 = vld [vmem:[%s0 + $0x148] sm:$0xff]
    %v61 = vld [vmem:[%s0 + $0x150] sm:$0xff]
    %v62 = vld [vmem:[%s0 + $0x158] sm:$0xff]
    %v63 = vld [vmem:[%s0 + $0x160] sm:$0xff]
    %v64 = vld [vmem:[%s0 + $0x168] sm:$0xff]
    %v65 = vld [vmem:[%s0 + $0x170] sm:$0xff]
    %v66 = vld [vmem:[%s0 + $0x178] sm:$0xff]
    %v67 = vld [vmem:[%s0 + $0x180] sm:$0xff]
    %v68 = vld [vmem:[%s0 + $0x188] sm:$0xff]
    %v69 = vld [vmem:[%s0 + $0x190] sm:$0xff]
    %v70 = vld [vmem:[%s0 + $0x198] sm:$0xff]
    %v71 = vld [vmem:[%s0 + $0x1a0] sm:$0xff]
    %v72 = vld [vmem:[%s0 + $0x1a8] sm:$0xff]
    %v73 = vld [vmem:[%s0 + $0x1b0] sm:$0xff]
    %v74 = vld [vmem:[%s0 + $0x1b8] sm:$0xff]
    %v75 = vld [vmem:[%s0 + $0x1c0] sm:$0xff]
    %v76 = vld [vmem:[%s0 + $0x1c8] sm:$0xff]
    %v77 = vld [vmem:[%s0 + $0x1d0] sm:$0xff]
    %v78 = vld [vmem:[%s0 + $0x1d8] sm:$0xff]
    %v79 = vld [vmem:[%s0 + $0x1e0] sm:$0xff]
    %v80 = vld [vmem:[%s0 + $0x1e8] sm:$0xff]
    %v81 = vld [vmem:[%s0 + $0x1f0] sm:$0xff]
    %v82 = vld [vmem:[%s0 + $0x1f8] sm:$0xff]
    %v83 = vadd.f32 %v19, %v35
    %v84 = vadd.f32 %v20, %v36
    %v85 = vadd.f32 %v21, %v37
    %v86 = vadd.f32 %v22, %v38
    %v87 = vadd.f32 %v23, %v39
    %v88 = vadd.f32 %v24, %v40
    %v89 = vadd.f32 %v25, %v41
    %v90 = vadd.f32 %v26, %v42
    %v91 = vadd.f32 %v27, %v43
    %v92 = vadd.f32 %v28, %v44
    %v93 = vadd.f32 %v29, %v45
    %v94 = vadd.f32 %v30, %v46
    %v95 = vadd.f32 %v31, %v47
    %v96 = vadd.f32 %v32, %v48
    %v97 = vadd.f32 %v33, %v49
    %v98 = vadd.f32 %v34, %v50
    %v99 = vadd.f32 %v83, %v51
    %v100 = vadd.f32 %v84, %v52
    %v101 = vadd.f32 %v85, %v53
    %v102 = vadd.f32 %v86, %v54
    %v103 = vadd.f32 %v87, %v55
    %v104 = vadd.f32 %v88, %v56
    %v105 = vadd.f32 %v89, %v57
    %v106 = vadd.f32 %v90, %v58
    %v107 = vadd.f32 %v91, %v59
    %v108 = vadd.f32 %v92, %v60
    %v109 = vadd.f32 %v93, %v61
    %v110 = vadd.f32 %v94, %v62
    %v111 = vadd.f32 %v95, %v63
    %v112 = vadd.f32 %v96, %v64
    %v113 = vadd.f32 %v97, %v65
    %v114 = vadd.f32 %v98, %v66
    %v115 = vadd.f32 %v99, %v67
    %v116 = vadd.f32 %v100, %v68
    %v117 = vadd.f32 %v101, %v69
    %v118 = vadd.f32 %v102, %v70
    %v119 = vadd.f32 %v103, %v71
    %v120 = vadd.f32 %v104, %v72
    %v121 = vadd.f32 %v105, %v73
    %v122 = vadd.f32 %v106, %v74
    %v123 = vadd.f32 %v107, %v75
    %v124 = vadd.f32 %v108, %v76
    %v125 = vadd.f32 %v109, %v77
    %v126 = vadd.f32 %v110, %v78
    %v127 = vadd.f32 %v111, %v79
    %v128 = vadd.f32 %v112, %v80
    %v129 = vadd.f32 %v113, %v81
    %v130 = vadd.f32 %v114, %v82
    %v131 = vmul.f32 %v115, 0.25
    %v132 = vmul.f32 %v116, 0.25
    %v133 = vmul.f32 %v117, 0.25
    %v134 = vmul.f32 %v118, 0.25
    %v135 = vmul.f32 %v119, 0.25
    %v136 = vmul.f32 %v120, 0.25
    %v137 = vmul.f32 %v121, 0.25
    %v138 = vmul.f32 %v122, 0.25
    %v139 = vmul.f32 %v123, 0.25
    %v140 = vmul.f32 %v124, 0.25
    %v141 = vmul.f32 %v125, 0.25
    %v142 = vmul.f32 %v126, 0.25
    %v143 = vmul.f32 %v127, 0.25
    %v144 = vmul.f32 %v128, 0.25
    %v145 = vmul.f32 %v129, 0.25
    %v146 = vmul.f32 %v130, 0.25
    %v147 = vmax.f32 %v19, %v35
    %v148 = vmax.f32 %v20, %v36
    %v149 = vmax.f32 %v21, %v37
    %v150 = vmax.f32 %v22, %v38
    %v151 = vmax.f32 %v23, %v39
    %v152 = vmax.f32 %v24, %v40
    %v153 = vmax.f32 %v25, %v41
    %v154 = vmax.f32 %v26, %v42
    %v155 = vmax.f32 %v27, %v43
    %v156 = vmax.f32 %v28, %v44
    %v157 = vmax.f32 %v29, %v45
    %v158 = vmax.f32 %v30, %v46
    %v159 = vmax.f32 %v31, %v47
    %v160 = vmax.f32 %v32, %v48
    %v161 = vmax.f32 %v33, %v49
    %v162 = vmax.f32 %v34, %v50
    %v163 = vmax.f32 %v51, %v67
    %v164 = vmax.f32 %v52, %v68
    %v165 = vmax.f32 %v53, %v69
    %v166 = vmax.f32 %v54, %v70
    %v167 = vmax.f32 %v55, %v71
    %v168 = vmax.f32 %v56, %v72
    %v169 = vmax.f32 %v57, %v73
    %v170 = vmax.f32 %v58, %v74
    %v171 = vmax.f32 %v59, %v75
    %v172 = vmax.f32 %v60, %v76
    %v173 = vmax.f32 %v61, %v77
    %v174 = vmax.f32 %v62, %v78
    %v175 = vmax.f32 %v63, %v79
    %v176 = vmax.f32 %v64, %v80
    %v177 = vmax.f32 %v65, %v81
    %v178 = vmax.f32 %v66, %v82
    %v179 = vmax.f32 %v147, %v163
    %v180 = vmax.f32 %v148, %v164
    %v181 = vmax.f32 %v149, %v165
    %v182 = vmax.f32 %v150, %v166
    %v183 = vmax.f32 %v151, %v167
    %v184 = vmax.f32 %v152, %v168
    %v185 = vmax.f32 %v153, %v169
    %v186 = vmax.f32 %v154, %v170
    %v187 = vmax.f32 %v155, %v171
    %v188 = vmax.f32 %v156, %v172
    %v189 = vmax.f32 %v157, %v173
    %v190 = vmax.f32 %v158, %v174
    %v191 = vmax.f32 %v159, %v175
    %v192 = vmax.f32 %v160, %v176
    %v193 = vmax.f32 %v161, %v177
    %v194 = vmax.f32 %v162, %v178
    %v195 = vld [vmem:[%s1] sm:$0xf]
    %vm196 = vcmask 31744
    %v198 = vsel %vm196, %v19, 0
    %v201 = vsel %vm196, %v20, 0
    %v204 = vsel %vm196, %v21, 0
    %v207 = vsel %vm196, %v22, 0
    %v210 = vsel %vm196, %v23, 0
    %v213 = vsel %vm196, %v24, 0
    %v216 = vsel %vm196, %v25, 0
    %v219 = vsel %vm196, %v26, 0
    %v222 = vsel %vm196, %v27, 0
    %v225 = vsel %vm196, %v28, 0
    %v228 = vsel %vm196, %v29, 0
    %v231 = vsel %vm196, %v30, 0
    %v234 = vsel %vm196, %v31, 0
    %v237 = vsel %vm196, %v32, 0
    %v240 = vsel %vm196, %v33, 0
    %v243 = vsel %vm196, %v34, 0
    %v246 = vsel %vm196, %v35, 0
    %v249 = vsel %vm196, %v36, 0
    %v252 = vsel %vm196, %v37, 0
    %v255 = vsel %vm196, %v38, 0
    %v258 = vsel %vm196, %v39, 0
    %v261 = vsel %vm196, %v40, 0
    %v264 = vsel %vm196, %v41, 0
    %v267 = vsel %vm196, %v42, 0
    %v270 = vsel %vm196, %v43, 0
    %v273 = vsel %vm196, %v44, 0
    %v276 = vsel %vm196, %v45, 0
    %v279 = vsel %vm196, %v46, 0
    %v282 = vsel %vm196, %v47, 0
    %v285 = vsel %vm196, %v48, 0
    %v288 = vsel %vm196, %v49, 0
    %v291 = vsel %vm196, %v50, 0
    %v294 = vsel %vm196, %v51, 0
    %v297 = vsel %vm196, %v52, 0
    %v300 = vsel %vm196, %v53, 0
    %v303 = vsel %vm196, %v54, 0
    %v306 = vsel %vm196, %v55, 0
    %v309 = vsel %vm196, %v56, 0
    %v312 = vsel %vm196, %v57, 0
    %v315 = vsel %vm196, %v58, 0
    %v318 = vsel %vm196, %v59, 0
    %v321 = vsel %vm196, %v60, 0
    %v324 = vsel %vm196, %v61, 0
    %v327 = vsel %vm196, %v62, 0
    %v330 = vsel %vm196, %v63, 0
    %v333 = vsel %vm196, %v64, 0
    %v336 = vsel %vm196, %v65, 0
    %v339 = vsel %vm196, %v66, 0
    %v342 = vsel %vm196, %v67, 0
    %v345 = vsel %vm196, %v68, 0
    %v348 = vsel %vm196, %v69, 0
    %v351 = vsel %vm196, %v70, 0
    %v354 = vsel %vm196, %v71, 0
    %v357 = vsel %vm196, %v72, 0
    %v360 = vsel %vm196, %v73, 0
    %v363 = vsel %vm196, %v74, 0
    %v366 = vsel %vm196, %v75, 0
    %v369 = vsel %vm196, %v76, 0
    %v372 = vsel %vm196, %v77, 0
    %v375 = vsel %vm196, %v78, 0
    %v378 = vsel %vm196, %v79, 0
    %v381 = vsel %vm196, %v80, 0
    %v384 = vsel %vm196, %v81, 0
    %v387 = vsel %vm196, %v82, 0
    %vm389 = vcmask 1043456
    %v391 = vsel %vm389, %v195, 0
    %393 = vmatpush.msra.mxu0 0.0
    %394 = vmatpush.msra.mxu0 0.0
    %395 = vmatpush.msra.mxu0 0.0
    %396 = vmatpush.msra.mxu0 0.0
    %397 = vmatpush.msra.mxu0 0.0
    %398 = vmatpush.msra.mxu0 0.0
    %399 = vmatpush.msra.mxu0 0.0
    %400 = vmatpush.msra.mxu0 0.0
    %401 = vmatpush.msra.mxu0 0.0
    %402 = vmatpush.msra.mxu0 0.0
    %403 = vmatpush.msra.mxu0 0.0
    %404 = vmatpush.msra.mxu0 0.0
    %405 = vmatpush.msra.mxu0 0.0
    %406 = vmatpush.msra.mxu0 0.0
    %407 = vmatpush.msra.mxu0 0.0
    %408 = vmatpush.msra.mxu0 %v391
    %409 = vmatmul.f32.gmra.mxu0 %v198
    %v410 = vpop.f32.mrf.mxu0
    %v411 = vadd.f32 0.0, %v410
    %412 = vmatmul.f32.gmra.mxu0 %v201
    %v413 = vpop.f32.mrf.mxu0
    %v414 = vadd.f32 0.0, %v413
    %415 = vmatmul.f32.gmra.mxu0 %v204
    %v416 = vpop.f32.mrf.mxu0
    %v417 = vadd.f32 0.0, %v416
    %418 = vmatmul.f32.gmra.mxu0 %v207
    %v419 = vpop.f32.mrf.mxu0
    %v420 = vadd.f32 0.0, %v419
    %421 = vmatmul.f32.gmra.mxu0 %v210
    %v422 = vpop.f32.mrf.mxu0
    %v423 = vadd.f32 0.0, %v422
    %424 = vmatmul.f32.gmra.mxu0 %v213
    %v425 = vpop.f32.mrf.mxu0
    %v426 = vadd.f32 0.0, %v425
    %427 = vmatmul.f32.gmra.mxu0 %v216
    %v428 = vpop.f32.mrf.mxu0
    %v429 = vadd.f32 0.0, %v428
    %430 = vmatmul.f32.gmra.mxu0 %v219
    %v431 = vpop.f32.mrf.mxu0
    %v432 = vadd.f32 0.0, %v431
    %433 = vmatmul.f32.gmra.mxu0 %v222
    %v434 = vpop.f32.mrf.mxu0
    %v435 = vadd.f32 0.0, %v434
    %436 = vmatmul.f32.gmra.mxu0 %v225
    %v437 = vpop.f32.mrf.mxu0
    %v438 = vadd.f32 0.0, %v437
    %439 = vmatmul.f32.gmra.mxu0 %v228
    %v440 = vpop.f32.mrf.mxu0
    %v441 = vadd.f32 0.0, %v440
    %442 = vmatmul.f32.gmra.mxu0 %v231
    %v443 = vpop.f32.mrf.mxu0
    %v444 = vadd.f32 0.0, %v443
    %445 = vmatmul.f32.gmra.mxu0 %v234
    %v446 = vpop.f32.mrf.mxu0
    %v447 = vadd.f32 0.0, %v446
    %448 = vmatmul.f32.gmra.mxu0 %v237
    %v449 = vpop.f32.mrf.mxu0
    %v450 = vadd.f32 0.0, %v449
    %451 = vmatmul.f32.gmra.mxu0 %v240
    %v452 = vpop.f32.mrf.mxu0
    %v453 = vadd.f32 0.0, %v452
    %454 = vmatmul.f32.gmra.mxu0 %v243
    %v455 = vpop.f32.mrf.mxu0
    %v456 = vadd.f32 0.0, %v455
    %457 = vmatmul.f32.gmra.mxu0 %v246
    %v458 = vpop.f32.mrf.mxu0
    %v459 = vadd.f32 0.0, %v458
    %460 = vmatmul.f32.gmra.mxu0 %v249
    %v461 = vpop.f32.mrf.mxu0
    %v462 = vadd.f32 0.0, %v461
    %463 = vmatmul.f32.gmra.mxu0 %v252
    %v464 = vpop.f32.mrf.mxu0
    %v465 = vadd.f32 0.0, %v464
    %466 = vmatmul.f32.gmra.mxu0 %v255
    %v467 = vpop.f32.mrf.mxu0
    %v468 = vadd.f32 0.0, %v467
    %469 = vmatmul.f32.gmra.mxu0 %v258
    %v470 = vpop.f32.mrf.mxu0
    %v471 = vadd.f32 0.0, %v470
    %472 = vmatmul.f32.gmra.mxu0 %v261
    %v473 = vpop.f32.mrf.mxu0
    %v474 = vadd.f32 0.0, %v473
    %475 = vmatmul.f32.gmra.mxu0 %v264
    %v476 = vpop.f32.mrf.mxu0
    %v477 = vadd.f32 0.0, %v476
    %478 = vmatmul.f32.gmra.mxu0 %v267
    %v479 = vpop.f32.mrf.mxu0
    %v480 = vadd.f32 0.0, %v479
    %481 = vmatmul.f32.gmra.mxu0 %v270
    %v482 = vpop.f32.mrf.mxu0
    %v483 = vadd.f32 0.0, %v482
    %484 = vmatmul.f32.gmra.mxu0 %v273
    %v485 = vpop.f32.mrf.mxu0
    %v486 = vadd.f32 0.0, %v485
    %487 = vmatmul.f32.gmra.mxu0 %v276
    %v488 = vpop.f32.mrf.mxu0
    %v489 = vadd.f32 0.0, %v488
    %490 = vmatmul.f32.gmra.mxu0 %v279
    %v491 = vpop.f32.mrf.mxu0
    %v492 = vadd.f32 0.0, %v491
    %493 = vmatmul.f32.gmra.mxu0 %v282
    %v494 = vpop.f32.mrf.mxu0
    %v495 = vadd.f32 0.0, %v494
    %496 = vmatmul.f32.gmra.mxu0 %v285
    %v497 = vpop.f32.mrf.mxu0
    %v498 = vadd.f32 0.0, %v497
    %499 = vmatmul.f32.gmra.mxu0 %v288
    %v500 = vpop.f32.mrf.mxu0
    %v501 = vadd.f32 0.0, %v500
    %502 = vmatmul.f32.gmra.mxu0 %v291
    %v503 = vpop.f32.mrf.mxu0
    %v504 = vadd.f32 0.0, %v503
    %505 = vmatmul.f32.gmra.mxu0 %v294
    %v506 = vpop.f32.mrf.mxu0
    %v507 = vadd.f32 0.0, %v506
    %508 = vmatmul.f32.gmra.mxu0 %v297
    %v509 = vpop.f32.mrf.mxu0
    %v510 = vadd.f32 0.0, %v509
    %511 = vmatmul.f32.gmra.mxu0 %v300
    %v512 = vpop.f32.mrf.mxu0
    %v513 = vadd.f32 0.0, %v512
    %514 = vmatmul.f32.gmra.mxu0 %v303
    %v515 = vpop.f32.mrf.mxu0
    %v516 = vadd.f32 0.0, %v515
    %517 = vmatmul.f32.gmra.mxu0 %v306
    %v518 = vpop.f32.mrf.mxu0
    %v519 = vadd.f32 0.0, %v518
    %520 = vmatmul.f32.gmra.mxu0 %v309
    %v521 = vpop.f32.mrf.mxu0
    %v522 = vadd.f32 0.0, %v521
    %523 = vmatmul.f32.gmra.mxu0 %v312
    %v524 = vpop.f32.mrf.mxu0
    %v525 = vadd.f32 0.0, %v524
    %526 = vmatmul.f32.gmra.mxu0 %v315
    %v527 = vpop.f32.mrf.mxu0
    %v528 = vadd.f32 0.0, %v527
    %529 = vmatmul.f32.gmra.mxu0 %v318
    %v530 = vpop.f32.mrf.mxu0
    %v531 = vadd.f32 0.0, %v530
    %532 = vmatmul.f32.gmra.mxu0 %v321
    %v533 = vpop.f32.mrf.mxu0
    %v534 = vadd.f32 0.0, %v533
    %535 = vmatmul.f32.gmra.mxu0 %v324
    %v536 = vpop.f32.mrf.mxu0
    %v537 = vadd.f32 0.0, %v536
    %538 = vmatmul.f32.gmra.mxu0 %v327
    %v539 = vpop.f32.mrf.mxu0
    %v540 = vadd.f32 0.0, %v539
    %541 = vmatmul.f32.gmra.mxu0 %v330
    %v542 = vpop.f32.mrf.mxu0
    %v543 = vadd.f32 0.0, %v542
    %544 = vmatmul.f32.gmra.mxu0 %v333
    %v545 = vpop.f32.mrf.mxu0
    %v546 = vadd.f32 0.0, %v545
    %547 = vmatmul.f32.gmra.mxu0 %v336
    %v548 = vpop.f32.mrf.mxu0
    %v549 = vadd.f32 0.0, %v548
    %550 = vmatmul.f32.gmra.mxu0 %v339
    %v551 = vpop.f32.mrf.mxu0
    %v552 = vadd.f32 0.0, %v551
    %553 = vmatmul.f32.gmra.mxu0 %v342
    %v554 = vpop.f32.mrf.mxu0
    %v555 = vadd.f32 0.0, %v554
    %556 = vmatmul.f32.gmra.mxu0 %v345
    %v557 = vpop.f32.mrf.mxu0
    %v558 = vadd.f32 0.0, %v557
    %559 = vmatmul.f32.gmra.mxu0 %v348
    %v560 = vpop.f32.mrf.mxu0
    %v561 = vadd.f32 0.0, %v560
    %562 = vmatmul.f32.gmra.mxu0 %v351
    %v563 = vpop.f32.mrf.mxu0
    %v564 = vadd.f32 0.0, %v563
    %565 = vmatmul.f32.gmra.mxu0 %v354
    %v566 = vpop.f32.mrf.mxu0
    %v567 = vadd.f32 0.0, %v566
    %568 = vmatmul.f32.gmra.mxu0 %v357
    %v569 = vpop.f32.mrf.mxu0
    %v570 = vadd.f32 0.0, %v569
    %571 = vmatmul.f32.gmra.mxu0 %v360
    %v572 = vpop.f32.mrf.mxu0
    %v573 = vadd.f32 0.0, %v572
    %574 = vmatmul.f32.gmra.mxu0 %v363
    %v575 = vpop.f32.mrf.mxu0
    %v576 = vadd.f32 0.0, %v575
    %577 = vmatmul.f32.gmra.mxu0 %v366
    %v578 = vpop.f32.mrf.mxu0
    %v579 = vadd.f32 0.0, %v578
    %580 = vmatmul.f32.gmra.mxu0 %v369
    %v581 = vpop.f32.mrf.mxu0
    %v582 = vadd.f32 0.0, %v581
    %583 = vmatmul.f32.gmra.mxu0 %v372
    %v584 = vpop.f32.mrf.mxu0
    %v585 = vadd.f32 0.0, %v584
    %586 = vmatmul.f32.gmra.mxu0 %v375
    %v587 = vpop.f32.mrf.mxu0
    %v588 = vadd.f32 0.0, %v587
    %589 = vmatmul.f32.gmra.mxu0 %v378
    %v590 = vpop.f32.mrf.mxu0
    %v591 = vadd.f32 0.0, %v590
    %592 = vmatmul.f32.gmra.mxu0 %v381
    %v593 = vpop.f32.mrf.mxu0
    %v594 = vadd.f32 0.0, %v593
    %595 = vmatmul.f32.gmra.mxu0 %v384
    %v596 = vpop.f32.mrf.mxu0
    %v597 = vadd.f32 0.0, %v596
    %598 = vmatmul.f32.gmra.mxu0 %v387
    %v599 = vpop.f32.mrf.mxu0
    %v600 = vadd.f32 0.0, %v599
    %601 = vdwg.mxu0
    %618 = vrot.lane.b32.xlu0 %v179, 4
    %v619 = vpop.permute.xlu0 %618
    %620 = vrot.lane.b32.xlu0 %v180, 4
    %v621 = vpop.permute.xlu0 %620
    %622 = vrot.lane.b32.xlu0 %v181, 4
    %v623 = vpop.permute.xlu0 %622
    %624 = vrot.lane.b32.xlu0 %v182, 4
    %v625 = vpop.permute.xlu0 %624
    %626 = vrot.lane.b32.xlu0 %v183, 4
    %v627 = vpop.permute.xlu0 %626
    %628 = vrot.lane.b32.xlu0 %v184, 4
    %v629 = vpop.permute.xlu0 %628
    %630 = vrot.lane.b32.xlu0 %v185, 4
    %v631 = vpop.permute.xlu0 %630
    %632 = vrot.lane.b32.xlu0 %v186, 4
    %v633 = vpop.permute.xlu0 %632
    %634 = vrot.lane.b32.xlu0 %v187, 4
    %v635 = vpop.permute.xlu0 %634
    %636 = vrot.lane.b32.xlu0 %v188, 4
    %v637 = vpop.permute.xlu0 %636
    %638 = vrot.lane.b32.xlu0 %v189, 4
    %v639 = vpop.permute.xlu0 %638
    %640 = vrot.lane.b32.xlu0 %v190, 4
    %v641 = vpop.permute.xlu0 %640
    %642 = vrot.lane.b32.xlu0 %v191, 4
    %v643 = vpop.permute.xlu0 %642
    %644 = vrot.lane.b32.xlu0 %v192, 4
    %v645 = vpop.permute.xlu0 %644
    %646 = vrot.lane.b32.xlu0 %v193, 4
    %v647 = vpop.permute.xlu0 %646
    %648 = vrot.lane.b32.xlu0 %v194, 4
    %v649 = vpop.permute.xlu0 %648
    %v666 = vsel %vm196, %v131, %v619
    %v667 = vsel %vm196, %v132, %v621
    %v668 = vsel %vm196, %v133, %v623
    %v669 = vsel %vm196, %v134, %v625
    %v670 = vsel %vm196, %v135, %v627
    %v671 = vsel %vm196, %v136, %v629
    %v672 = vsel %vm196, %v137, %v631
    %v673 = vsel %vm196, %v138, %v633
    %v674 = vsel %vm196, %v139, %v635
    %v675 = vsel %vm196, %v140, %v637
    %v676 = vsel %vm196, %v141, %v639
    %v677 = vsel %vm196, %v142, %v641
    %v678 = vsel %vm196, %v143, %v643
    %v679 = vsel %vm196, %v144, %v645
    %v680 = vsel %vm196, %v145, %v647
    %v681 = vsel %vm196, %v146, %v649
    %v682 = vld [vmem:[%s2] sm:$0xff]
    %vm683 = vcmask 64512
    %v685 = vsel %vm683, %v666, 0
    %v688 = vsel %vm683, %v667, 0
    %v691 = vsel %vm683, %v668, 0
    %v694 = vsel %vm683, %v669, 0
    %v697 = vsel %vm683, %v670, 0
    %v700 = vsel %vm683, %v671, 0
    %v703 = vsel %vm683, %v672, 0
    %v706 = vsel %vm683, %v673, 0
    %v709 = vsel %vm683, %v674, 0
    %v712 = vsel %vm683, %v675, 0
    %v715 = vsel %vm683, %v676, 0
    %v718 = vsel %vm683, %v677, 0
    %v721 = vsel %vm683, %v678, 0
    %v724 = vsel %vm683, %v679, 0
    %v727 = vsel %vm683, %v680, 0
    %v730 = vsel %vm683, %v681, 0
    %732 = vmatpush.msra.mxu0 0.0
    %733 = vmatpush.msra.mxu0 0.0
    %734 = vmatpush.msra.mxu0 0.0
    %735 = vmatpush.msra.mxu0 0.0
    %736 = vmatpush.msra.mxu0 0.0
    %737 = vmatpush.msra.mxu0 0.0
    %738 = vmatpush.msra.mxu0 0.0
    %739 = vmatpush.msra.mxu0 0.0
    %740 = vmatpush.msra.mxu0 0.0
    %741 = vmatpush.msra.mxu0 0.0
    %742 = vmatpush.msra.mxu0 0.0
    %743 = vmatpush.msra.mxu0 0.0
    %744 = vmatpush.msra.mxu0 0.0
    %745 = vmatpush.msra.mxu0 0.0
    %746 = vmatpush.msra.mxu0 0.0
    %747 = vmatpush.msra.mxu0 %v682
    %748 = vmatmul.f32.gmra.mxu0 %v685
    %v749 = vpop.f32.mrf.mxu0
    %v750 = vadd.f32 0.0, %v749
    %751 = vmatmul.f32.gmra.mxu0 %v688
    %v752 = vpop.f32.mrf.mxu0
    %v753 = vadd.f32 0.0, %v752
    %754 = vmatmul.f32.gmra.mxu0 %v691
    %v755 = vpop.f32.mrf.mxu0
    %v756 = vadd.f32 0.0, %v755
    %757 = vmatmul.f32.gmra.mxu0 %v694
    %v758 = vpop.f32.mrf.mxu0
    %v759 = vadd.f32 0.0, %v758
    %760 = vmatmul.f32.gmra.mxu0 %v697
    %v761 = vpop.f32.mrf.mxu0
    %v762 = vadd.f32 0.0, %v761
    %763 = vmatmul.f32.gmra.mxu0 %v700
    %v764 = vpop.f32.mrf.mxu0
    %v765 = vadd.f32 0.0, %v764
    %766 = vmatmul.f32.gmra.mxu0 %v703
    %v767 = vpop.f32.mrf.mxu0
    %v768 = vadd.f32 0.0, %v767
    %769 = vmatmul.f32.gmra.mxu0 %v706
    %v770 = vpop.f32.mrf.mxu0
    %v771 = vadd.f32 0.0, %v770
    %772 = vmatmul.f32.gmra.mxu0 %v709
    %v773 = vpop.f32.mrf.mxu0
    %v774 = vadd.f32 0.0, %v773
    %775 = vmatmul.f32.gmra.mxu0 %v712
    %v776 = vpop.f32.mrf.mxu0
    %v777 = vadd.f32 0.0, %v776
    %778 = vmatmul.f32.gmra.mxu0 %v715
    %v779 = vpop.f32.mrf.mxu0
    %v780 = vadd.f32 0.0, %v779
    %781 = vmatmul.f32.gmra.mxu0 %v718
    %v782 = vpop.f32.mrf.mxu0
    %v783 = vadd.f32 0.0, %v782
    %784 = vmatmul.f32.gmra.mxu0 %v721
    %v785 = vpop.f32.mrf.mxu0
    %v786 = vadd.f32 0.0, %v785
    %787 = vmatmul.f32.gmra.mxu0 %v724
    %v788 = vpop.f32.mrf.mxu0
    %v789 = vadd.f32 0.0, %v788
    %790 = vmatmul.f32.gmra.mxu0 %v727
    %v791 = vpop.f32.mrf.mxu0
    %v792 = vadd.f32 0.0, %v791
    %793 = vmatmul.f32.gmra.mxu0 %v730
    %v794 = vpop.f32.mrf.mxu0
    %v795 = vadd.f32 0.0, %v794
    %796 = vdwg.mxu0
    %v797 = vadd.f32 %v411, %v750
    %v798 = vadd.f32 %v414, %v753
    %v799 = vadd.f32 %v417, %v756
    %v800 = vadd.f32 %v420, %v759
    %v801 = vadd.f32 %v423, %v762
    %v802 = vadd.f32 %v426, %v765
    %v803 = vadd.f32 %v429, %v768
    %v804 = vadd.f32 %v432, %v771
    %v805 = vadd.f32 %v435, %v774
    %v806 = vadd.f32 %v438, %v777
    %v807 = vadd.f32 %v441, %v780
    %v808 = vadd.f32 %v444, %v783
    %v809 = vadd.f32 %v447, %v786
    %v810 = vadd.f32 %v450, %v789
    %v811 = vadd.f32 %v453, %v792
    %v812 = vadd.f32 %v456, %v795
    %v813 = vadd.f32 %v459, %v750
    %v814 = vadd.f32 %v462, %v753
    %v815 = vadd.f32 %v465, %v756
    %v816 = vadd.f32 %v468, %v759
    %v817 = vadd.f32 %v471, %v762
    %v818 = vadd.f32 %v474, %v765
    %v819 = vadd.f32 %v477, %v768
    %v820 = vadd.f32 %v480, %v771
    %v821 = vadd.f32 %v483, %v774
    %v822 = vadd.f32 %v486, %v777
    %v823 = vadd.f32 %v489, %v780
    %v824 = vadd.f32 %v492, %v783
    %v825 = vadd.f32 %v495, %v786
    %v826 = vadd.f32 %v498, %v789
    %v827 = vadd.f32 %v501, %v792
    %v828 = vadd.f32 %v504, %v795
    %v829 = vadd.f32 %v507, %v750
    %v830 = vadd.f32 %v510, %v753
    %v831 = vadd.f32 %v513, %v756
    %v832 = vadd.f32 %v516, %v759
    %v833 = vadd.f32 %v519, %v762
    %v834 = vadd.f32 %v522, %v765
    %v835 = vadd.f32 %v525, %v768
    %v836 = vadd.f32 %v528, %v771
    %v837 = vadd.f32 %v531, %v774
    %v838 = vadd.f32 %v534, %v777
    %v839 = vadd.f32 %v537, %v780
    %v840 = vadd.f32 %v540, %v783
    %v841 = vadd.f32 %v543, %v786
    %v842 = vadd.f32 %v546, %v789
    %v843 = vadd.f32 %v549, %v792
    %v844 = vadd.f32 %v552, %v795
    %v845 = vadd.f32 %v555, %v750
    %v846 = vadd.f32 %v558, %v753
    %v847 = vadd.f32 %v561, %v756
    %v848 = vadd.f32 %v564, %v759
    %v849 = vadd.f32 %v567, %v762
    %v850 = vadd.f32 %v570, %v765
    %v851 = vadd.f32 %v573, %v768
    %v852 = vadd.f32 %v576, %v771
    %v853 = vadd.f32 %v579, %v774
    %v854 = vadd.f32 %v582, %v777
    %v855 = vadd.f32 %v585, %v780
    %v856 = vadd.f32 %v588, %v783
    %v857 = vadd.f32 %v591, %v786
    %v858 = vadd.f32 %v594, %v789
    %v859 = vadd.f32 %v597, %v792
    %v860 = vadd.f32 %v600, %v795
    %861 = vst.msk [vmem:[%s3] sm:$0xff] %vm683, %v797
    %862 = vst.msk [vmem:[%s3 + $0x8] sm:$0xff] %vm683, %v798
    %863 = vst.msk [vmem:[%s3 + $0x10] sm:$0xff] %vm683, %v799
    %864 = vst.msk [vmem:[%s3 + $0x18] sm:$0xff] %vm683, %v800
    %865 = vst.msk [vmem:[%s3 + $0x20] sm:$0xff] %vm683, %v801
    %866 = vst.msk [vmem:[%s3 + $0x28] sm:$0xff] %vm683, %v802
    %867 = vst.msk [vmem:[%s3 + $0x30] sm:$0xff] %vm683, %v803
    %868 = vst.msk [vmem:[%s3 + $0x38] sm:$0xff] %vm683, %v804
    %869 = vst.msk [vmem:[%s3 + $0x40] sm:$0xff] %vm683, %v805
    %870 = vst.msk [vmem:[%s3 + $0x48] sm:$0xff] %vm683, %v806
    %871 = vst.msk [vmem:[%s3 + $0x50] sm:$0xff] %vm683, %v807
    %872 = vst.msk [vmem:[%s3 + $0x58] sm:$0xff] %vm683, %v808
    %873 = vst.msk [vmem:[%s3 + $0x60] sm:$0xff] %vm683, %v809
    %874 = vst.msk [vmem:[%s3 + $0x68] sm:$0xff] %vm683, %v810
    %875 = vst.msk [vmem:[%s3 + $0x70] sm:$0xff] %vm683, %v811
    %876 = vst.msk [vmem:[%s3 + $0x78] sm:$0xff] %vm683, %v812
    %877 = vst.msk [vmem:[%s3 + $0x80] sm:$0xff] %vm683, %v813
    %878 = vst.msk [vmem:[%s3 + $0x88] sm:$0xff] %vm683, %v814
    %879 = vst.msk [vmem:[%s3 + $0x90] sm:$0xff] %vm683, %v815
    %880 = vst.msk [vmem:[%s3 + $0x98] sm:$0xff] %vm683, %v816
    %881 = vst.msk [vmem:[%s3 + $0xa0] sm:$0xff] %vm683, %v817
    %882 = vst.msk [vmem:[%s3 + $0xa8] sm:$0xff] %vm683, %v818
    %883 = vst.msk [vmem:[%s3 + $0xb0] sm:$0xff] %vm683, %v819
    %884 = vst.msk [vmem:[%s3 + $0xb8] sm:$0xff] %vm683, %v820
    %885 = vst.msk [vmem:[%s3 + $0xc0] sm:$0xff] %vm683, %v821
    %886 = vst.msk [vmem:[%s3 + $0xc8] sm:$0xff] %vm683, %v822
    %887 = vst.msk [vmem:[%s3 + $0xd0] sm:$0xff] %vm683, %v823
    %888 = vst.msk [vmem:[%s3 + $0xd8] sm:$0xff] %vm683, %v824
    %889 = vst.msk [vmem:[%s3 + $0xe0] sm:$0xff] %vm683, %v825
    %890 = vst.msk [vmem:[%s3 + $0xe8] sm:$0xff] %vm683, %v826
    %891 = vst.msk [vmem:[%s3 + $0xf0] sm:$0xff] %vm683, %v827
    %892 = vst.msk [vmem:[%s3 + $0xf8] sm:$0xff] %vm683, %v828
    %893 = vst.msk [vmem:[%s3 + $0x100] sm:$0xff] %vm683, %v829
    %894 = vst.msk [vmem:[%s3 + $0x108] sm:$0xff] %vm683, %v830
    %895 = vst.msk [vmem:[%s3 + $0x110] sm:$0xff] %vm683, %v831
    %896 = vst.msk [vmem:[%s3 + $0x118] sm:$0xff] %vm683, %v832
    %897 = vst.msk [vmem:[%s3 + $0x120] sm:$0xff] %vm683, %v833
    %898 = vst.msk [vmem:[%s3 + $0x128] sm:$0xff] %vm683, %v834
    %899 = vst.msk [vmem:[%s3 + $0x130] sm:$0xff] %vm683, %v835
    %900 = vst.msk [vmem:[%s3 + $0x138] sm:$0xff] %vm683, %v836
    %901 = vst.msk [vmem:[%s3 + $0x140] sm:$0xff] %vm683, %v837
    %902 = vst.msk [vmem:[%s3 + $0x148] sm:$0xff] %vm683, %v838
    %903 = vst.msk [vmem:[%s3 + $0x150] sm:$0xff] %vm683, %v839
    %904 = vst.msk [vmem:[%s3 + $0x158] sm:$0xff] %vm683, %v840
    %905 = vst.msk [vmem:[%s3 + $0x160] sm:$0xff] %vm683, %v841
    %906 = vst.msk [vmem:[%s3 + $0x168] sm:$0xff] %vm683, %v842
    %907 = vst.msk [vmem:[%s3 + $0x170] sm:$0xff] %vm683, %v843
    %908 = vst.msk [vmem:[%s3 + $0x178] sm:$0xff] %vm683, %v844
    %909 = vst.msk [vmem:[%s3 + $0x180] sm:$0xff] %vm683, %v845
    %910 = vst.msk [vmem:[%s3 + $0x188] sm:$0xff] %vm683, %v846
    %911 = vst.msk [vmem:[%s3 + $0x190] sm:$0xff] %vm683, %v847
    %912 = vst.msk [vmem:[%s3 + $0x198] sm:$0xff] %vm683, %v848
    %913 = vst.msk [vmem:[%s3 + $0x1a0] sm:$0xff] %vm683, %v849
    %914 = vst.msk [vmem:[%s3 + $0x1a8] sm:$0xff] %vm683, %v850
    %915 = vst.msk [vmem:[%s3 + $0x1b0] sm:$0xff] %vm683, %v851
    %916 = vst.msk [vmem:[%s3 + $0x1b8] sm:$0xff] %vm683, %v852
    %917 = vst.msk [vmem:[%s3 + $0x1c0] sm:$0xff] %vm683, %v853
    %918 = vst.msk [vmem:[%s3 + $0x1c8] sm:$0xff] %vm683, %v854
    %919 = vst.msk [vmem:[%s3 + $0x1d0] sm:$0xff] %vm683, %v855
    %920 = vst.msk [vmem:[%s3 + $0x1d8] sm:$0xff] %vm683, %v856
    %921 = vst.msk [vmem:[%s3 + $0x1e0] sm:$0xff] %vm683, %v857
    %922 = vst.msk [vmem:[%s3 + $0x1e8] sm:$0xff] %vm683, %v858
    %923 = vst.msk [vmem:[%s3 + $0x1f0] sm:$0xff] %vm683, %v859
    %924 = vst.msk [vmem:[%s3 + $0x1f8] sm:$0xff] %vm683, %v860
    %v925 = vsel %vm683, %v797, 0.0
    %v926 = vsel %vm683, %v813, 0.0
    %v927 = vadd.f32 %v925, %v926
    %v928 = vsel %vm683, %v829, 0.0
    %v929 = vadd.f32 %v927, %v928
    %v930 = vsel %vm683, %v845, 0.0
    %v931 = vadd.f32 %v929, %v930
    %v932 = vsel %vm683, %v798, 0.0
    %v933 = vsel %vm683, %v814, 0.0
    %v934 = vadd.f32 %v932, %v933
    %v935 = vsel %vm683, %v830, 0.0
    %v936 = vadd.f32 %v934, %v935
    %v937 = vsel %vm683, %v846, 0.0
    %v938 = vadd.f32 %v936, %v937
    %v939 = vsel %vm683, %v799, 0.0
    %v940 = vsel %vm683, %v815, 0.0
    %v941 = vadd.f32 %v939, %v940
    %v942 = vsel %vm683, %v831, 0.0
    %v943 = vadd.f32 %v941, %v942
    %v944 = vsel %vm683, %v847, 0.0
    %v945 = vadd.f32 %v943, %v944
    %v946 = vsel %vm683, %v800, 0.0
    %v947 = vsel %vm683, %v816, 0.0
    %v948 = vadd.f32 %v946, %v947
    %v949 = vsel %vm683, %v832, 0.0
    %v950 = vadd.f32 %v948, %v949
    %v951 = vsel %vm683, %v848, 0.0
    %v952 = vadd.f32 %v950, %v951
    %v953 = vsel %vm683, %v801, 0.0
    %v954 = vsel %vm683, %v817, 0.0
    %v955 = vadd.f32 %v953, %v954
    %v956 = vsel %vm683, %v833, 0.0
    %v957 = vadd.f32 %v955, %v956
    %v958 = vsel %vm683, %v849, 0.0
    %v959 = vadd.f32 %v957, %v958
    %v960 = vsel %vm683, %v802, 0.0
    %v961 = vsel %vm683, %v818, 0.0
    %v962 = vadd.f32 %v960, %v961
    %v963 = vsel %vm683, %v834, 0.0
    %v964 = vadd.f32 %v962, %v963
    %v965 = vsel %vm683, %v850, 0.0
    %v966 = vadd.f32 %v964, %v965
    %v967 = vsel %vm683, %v803, 0.0
    %v968 = vsel %vm683, %v819, 0.0
    %v969 = vadd.f32 %v967, %v968
    %v970 = vsel %vm683, %v835, 0.0
    %v971 = vadd.f32 %v969, %v970
    %v972 = vsel %vm683, %v851, 0.0
    %v973 = vadd.f32 %v971, %v972
    %v974 = vsel %vm683, %v804, 0.0
    %v975 = vsel %vm683, %v820, 0.0
    %v976 = vadd.f32 %v974, %v975
    %v977 = vsel %vm683, %v836, 0.0
    %v978 = vadd.f32 %v976, %v977
    %v979 = vsel %vm683, %v852, 0.0
    %v980 = vadd.f32 %v978, %v979
    %v981 = vsel %vm683, %v805, 0.0
    %v982 = vsel %vm683, %v821, 0.0
    %v983 = vadd.f32 %v981, %v982
    %v984 = vsel %vm683, %v837, 0.0
    %v985 = vadd.f32 %v983, %v984
    %v986 = vsel %vm683, %v853, 0.0
    %v987 = vadd.f32 %v985, %v986
    %v988 = vsel %vm683, %v806, 0.0
    %v989 = vsel %vm683, %v822, 0.0
    %v990 = vadd.f32 %v988, %v989
    %v991 = vsel %vm683, %v838, 0.0
    %v992 = vadd.f32 %v990, %v991
    %v993 = vsel %vm683, %v854, 0.0
    %v994 = vadd.f32 %v992, %v993
    %v995 = vsel %vm683, %v807, 0.0
    %v996 = vsel %vm683, %v823, 0.0
    %v997 = vadd.f32 %v995, %v996
    %v998 = vsel %vm683, %v839, 0.0
    %v999 = vadd.f32 %v997, %v998
    %v1000 = vsel %vm683, %v855, 0.0
    %v1001 = vadd.f32 %v999, %v1000
    %v1002 = vsel %vm683, %v808, 0.0
    %v1003 = vsel %vm683, %v824, 0.0
    %v1004 = vadd.f32 %v1002, %v1003
    %v1005 = vsel %vm683, %v840, 0.0
    %v1006 = vadd.f32 %v1004, %v1005
    %v1007 = vsel %vm683, %v856, 0.0
    %v1008 = vadd.f32 %v1006, %v1007
    %v1009 = vsel %vm683, %v809, 0.0
    %v1010 = vsel %vm683, %v825, 0.0
    %v1011 = vadd.f32 %v1009, %v1010
    %v1012 = vsel %vm683, %v841, 0.0
    %v1013 = vadd.f32 %v1011, %v1012
    %v1014 = vsel %vm683, %v857, 0.0
    %v1015 = vadd.f32 %v1013, %v1014
    %v1016 = vsel %vm683, %v810, 0.0
    %v1017 = vsel %vm683, %v826, 0.0
    %v1018 = vadd.f32 %v1016, %v1017
    %v1019 = vsel %vm683, %v842, 0.0
    %v1020 = vadd.f32 %v1018, %v1019
    %v1021 = vsel %vm683, %v858, 0.0
    %v1022 = vadd.f32 %v1020, %v1021
    %v1023 = vsel %vm683, %v811, 0.0
    %v1024 = vsel %vm683, %v827, 0.0
    %v1025 = vadd.f32 %v1023, %v1024
    %v1026 = vsel %vm683, %v843, 0.0
    %v1027 = vadd.f32 %v1025, %v1026
    %v1028 = vsel %vm683, %v859, 0.0
    %v1029 = vadd.f32 %v1027, %v1028
    %v1030 = vsel %vm683, %v812, 0.0
    %v1031 = vsel %vm683, %v828, 0.0
    %v1032 = vadd.f32 %v1030, %v1031
    %v1033 = vsel %vm683, %v844, 0.0
    %v1034 = vadd.f32 %v1032, %v1033
    %v1035 = vsel %vm683, %v860, 0.0
    %v1036 = vadd.f32 %v1034, %v1035
    %v1037 = vsel %vm683, %v931, 0.0
    %v1038 = vsel %vm683, %v938, 0.0
    %v1039 = vadd.f32 %v1037, %v1038
    %v1040 = vsel %vm683, %v945, 0.0
    %v1041 = vadd.f32 %v1039, %v1040
    %v1042 = vsel %vm683, %v952, 0.0
    %v1043 = vadd.f32 %v1041, %v1042
    %v1044 = vsel %vm683, %v959, 0.0
    %v1045 = vadd.f32 %v1043, %v1044
    %v1046 = vsel %vm683, %v966, 0.0
    %v1047 = vadd.f32 %v1045, %v1046
    %v1048 = vsel %vm683, %v973, 0.0
    %v1049 = vadd.f32 %v1047, %v1048
    %v1050 = vsel %vm683, %v980, 0.0
    %v1051 = vadd.f32 %v1049, %v1050
    %v1052 = vsel %vm683, %v987, 0.0
    %v1053 = vadd.f32 %v1051, %v1052
    %v1054 = vsel %vm683, %v994, 0.0
    %v1055 = vadd.f32 %v1053, %v1054
    %v1056 = vsel %vm683, %v1001, 0.0
    %v1057 = vadd.f32 %v1055, %v1056
    %v1058 = vsel %vm683, %v1008, 0.0
    %v1059 = vadd.f32 %v1057, %v1058
    %v1060 = vsel %vm683, %v1015, 0.0
    %v1061 = vadd.f32 %v1059, %v1060
    %v1062 = vsel %vm683, %v1022, 0.0
    %v1063 = vadd.f32 %v1061, %v1062
    %v1064 = vsel %vm683, %v1029, 0.0
    %v1065 = vadd.f32 %v1063, %v1064
    %v1066 = vsel %vm683, %v1036, 0.0
    %v1067 = vadd.f32 %v1065, %v1066
    %v1068 = vrot.slane %v1067, 4
    %v1069 = vadd.f32 %v1067, %v1068
    %v1070 = vrot.slane %v1069, 2
    %v1071 = vadd.f32 %v1069, %v1070
    %v1072 = vrot.slane %v1071, 1
    %v1073 = vadd.f32 %v1071, %v1072
    %v1074 = vmul.f32 %v797, %v797
    %v1075 = vmul.f32 %v798, %v798
    %v1076 = vmul.f32 %v799, %v799
    %v1077 = vmul.f32 %v800, %v800
    %v1078 = vmul.f32 %v801, %v801
    %v1079 = vmul.f32 %v802, %v802
    %v1080 = vmul.f32 %v803, %v803
    %v1081 = vmul.f32 %v804, %v804
    %v1082 = vmul.f32 %v805, %v805
    %v1083 = vmul.f32 %v806, %v806
    %v1084 = vmul.f32 %v807, %v807
    %v1085 = vmul.f32 %v808, %v808
    %v1086 = vmul.f32 %v809, %v809
    %v1087 = vmul.f32 %v810, %v810
    %v1088 = vmul.f32 %v811, %v811
    %v1089 = vmul.f32 %v812, %v812
    %v1090 = vmul.f32 %v813, %v813
    %v1091 = vmul.f32 %v814, %v814
    %v1092 = vmul.f32 %v815, %v815
    %v1093 = vmul.f32 %v816, %v816
    %v1094 = vmul.f32 %v817, %v817
    %v1095 = vmul.f32 %v818, %v818
    %v1096 = vmul.f32 %v819, %v819
    %v1097 = vmul.f32 %v820, %v820
    %v1098 = vmul.f32 %v821, %v821
    %v1099 = vmul.f32 %v822, %v822
    %v1100 = vmul.f32 %v823, %v823
    %v1101 = vmul.f32 %v824, %v824
    %v1102 = vmul.f32 %v825, %v825
    %v1103 = vmul.f32 %v826, %v826
    %v1104 = vmul.f32 %v827, %v827
    %v1105 = vmul.f32 %v828, %v828
    %v1106 = vmul.f32 %v829, %v829
    %v1107 = vmul.f32 %v830, %v830
    %v1108 = vmul.f32 %v831, %v831
    %v1109 = vmul.f32 %v832, %v832
    %v1110 = vmul.f32 %v833, %v833
    %v1111 = vmul.f32 %v834, %v834
    %v1112 = vmul.f32 %v835, %v835
    %v1113 = vmul.f32 %v836, %v836
    %v1114 = vmul.f32 %v837, %v837
    %v1115 = vmul.f32 %v838, %v838
    %v1116 = vmul.f32 %v839, %v839
    %v1117 = vmul.f32 %v840, %v840
    %v1118 = vmul.f32 %v841, %v841
    %v1119 = vmul.f32 %v842, %v842
    %v1120 = vmul.f32 %v843, %v843
    %v1121 = vmul.f32 %v844, %v844
    %v1122 = vmul.f32 %v845, %v845
    %v1123 = vmul.f32 %v846, %v846
    %v1124 = vmul.f32 %v847, %v847
    %v1125 = vmul.f32 %v848, %v848
    %v1126 = vmul.f32 %v849, %v849
    %v1127 = vmul.f32 %v850, %v850
    %v1128 = vmul.f32 %v851, %v851
    %v1129 = vmul.f32 %v852, %v852
    %v1130 = vmul.f32 %v853, %v853
    %v1131 = vmul.f32 %v854, %v854
    %v1132 = vmul.f32 %v855, %v855
    %v1133 = vmul.f32 %v856, %v856
    %v1134 = vmul.f32 %v857, %v857
    %v1135 = vmul.f32 %v858, %v858
    %v1136 = vmul.f32 %v859, %v859
    %v1137 = vmul.f32 %v860, %v860
    %v1138 = vsel %vm683, %v1074, 0.0
    %v1139 = vsel %vm683, %v1090, 0.0
    %v1140 = vadd.f32 %v1138, %v1139
    %v1141 = vsel %vm683, %v1106, 0.0
    %v1142 = vadd.f32 %v1140, %v1141
    %v1143 = vsel %vm683, %v1122, 0.0
    %v1144 = vadd.f32 %v1142, %v1143
    %v1145 = vsel %vm683, %v1075, 0.0
    %v1146 = vsel %vm683, %v1091, 0.0
    %v1147 = vadd.f32 %v1145, %v1146
    %v1148 = vsel %vm683, %v1107, 0.0
    %v1149 = vadd.f32 %v1147, %v1148
    %v1150 = vsel %vm683, %v1123, 0.0
    %v1151 = vadd.f32 %v1149, %v1150
    %v1152 = vsel %vm683, %v1076, 0.0
    %v1153 = vsel %vm683, %v1092, 0.0
    %v1154 = vadd.f32 %v1152, %v1153
    %v1155 = vsel %vm683, %v1108, 0.0
    %v1156 = vadd.f32 %v1154, %v1155
    %v1157 = vsel %vm683, %v1124, 0.0
    %v1158 = vadd.f32 %v1156, %v1157
    %v1159 = vsel %vm683, %v1077, 0.0
    %v1160 = vsel %vm683, %v1093, 0.0
    %v1161 = vadd.f32 %v1159, %v1160
    %v1162 = vsel %vm683, %v1109, 0.0
    %v1163 = vadd.f32 %v1161, %v1162
    %v1164 = vsel %vm683, %v1125, 0.0
    %v1165 = vadd.f32 %v1163, %v1164
    %v1166 = vsel %vm683, %v1078, 0.0
    %v1167 = vsel %vm683, %v1094, 0.0
    %v1168 = vadd.f32 %v1166, %v1167
    %v1169 = vsel %vm683, %v1110, 0.0
    %v1170 = vadd.f32 %v1168, %v1169
    %v1171 = vsel %vm683, %v1126, 0.0
    %v1172 = vadd.f32 %v1170, %v1171
    %v1173 = vsel %vm683, %v1079, 0.0
    %v1174 = vsel %vm683, %v1095, 0.0
    %v1175 = vadd.f32 %v1173, %v1174
    %v1176 = vsel %vm683, %v1111, 0.0
    %v1177 = vadd.f32 %v1175, %v1176
    %v1178 = vsel %vm683, %v1127, 0.0
    %v1179 = vadd.f32 %v1177, %v1178
    %v1180 = vsel %vm683, %v1080, 0.0
    %v1181 = vsel %vm683, %v1096, 0.0
    %v1182 = vadd.f32 %v1180, %v1181
    %v1183 = vsel %vm683, %v1112, 0.0
    %v1184 = vadd.f32 %v1182, %v1183
    %v1185 = vsel %vm683, %v1128, 0.0
    %v1186 = vadd.f32 %v1184, %v1185
    %v1187 = vsel %vm683, %v1081, 0.0
    %v1188 = vsel %vm683, %v1097, 0.0
    %v1189 = vadd.f32 %v1187, %v1188
    %v1190 = vsel %vm683, %v1113, 0.0
    %v1191 = vadd.f32 %v1189, %v1190
    %v1192 = vsel %vm683, %v1129, 0.0
    %v1193 = vadd.f32 %v1191, %v1192
    %v1194 = vsel %vm683, %v1082, 0.0
    %v1195 = vsel %vm683, %v1098, 0.0
    %v1196 = vadd.f32 %v1194, %v1195
    %v1197 = vsel %vm683, %v1114, 0.0
    %v1198 = vadd.f32 %v1196, %v1197
    %v1199 = vsel %vm683, %v1130, 0.0
    %v1200 = vadd.f32 %v1198, %v1199
    %v1201 = vsel %vm683, %v1083, 0.0
    %v1202 = vsel %vm683, %v1099, 0.0
    %v1203 = vadd.f32 %v1201, %v1202
    %v1204 = vsel %vm683, %v1115, 0.0
    %v1205 = vadd.f32 %v1203, %v1204
    %v1206 = vsel %vm683, %v1131, 0.0
    %v1207 = vadd.f32 %v1205, %v1206
    %v1208 = vsel %vm683, %v1084, 0.0
    %v1209 = vsel %vm683, %v1100, 0.0
    %v1210 = vadd.f32 %v1208, %v1209
    %v1211 = vsel %vm683, %v1116, 0.0
    %v1212 = vadd.f32 %v1210, %v1211
    %v1213 = vsel %vm683, %v1132, 0.0
    %v1214 = vadd.f32 %v1212, %v1213
    %v1215 = vsel %vm683, %v1085, 0.0
    %v1216 = vsel %vm683, %v1101, 0.0
    %v1217 = vadd.f32 %v1215, %v1216
    %v1218 = vsel %vm683, %v1117, 0.0
    %v1219 = vadd.f32 %v1217, %v1218
    %v1220 = vsel %vm683, %v1133, 0.0
    %v1221 = vadd.f32 %v1219, %v1220
    %v1222 = vsel %vm683, %v1086, 0.0
    %v1223 = vsel %vm683, %v1102, 0.0
    %v1224 = vadd.f32 %v1222, %v1223
    %v1225 = vsel %vm683, %v1118, 0.0
    %v1226 = vadd.f32 %v1224, %v1225
    %v1227 = vsel %vm683, %v1134, 0.0
    %v1228 = vadd.f32 %v1226, %v1227
    %v1229 = vsel %vm683, %v1087, 0.0
    %v1230 = vsel %vm683, %v1103, 0.0
    %v1231 = vadd.f32 %v1229, %v1230
    %v1232 = vsel %vm683, %v1119, 0.0
    %v1233 = vadd.f32 %v1231, %v1232
    %v1234 = vsel %vm683, %v1135, 0.0
    %v1235 = vadd.f32 %v1233, %v1234
    %v1236 = vsel %vm683, %v1088, 0.0
    %v1237 = vsel %vm683, %v1104, 0.0
    %v1238 = vadd.f32 %v1236, %v1237
    %v1239 = vsel %vm683, %v1120, 0.0
    %v1240 = vadd.f32 %v1238, %v1239
    %v1241 = vsel %vm683, %v1136, 0.0
    %v1242 = vadd.f32 %v1240, %v1241
    %v1243 = vsel %vm683, %v1089, 0.0
    %v1244 = vsel %vm683, %v1105, 0.0
    %v1245 = vadd.f32 %v1243, %v1244
    %v1246 = vsel %vm683, %v1121, 0.0
    %v1247 = vadd.f32 %v1245, %v1246
    %v1248 = vsel %vm683, %v1137, 0.0
    %v1249 = vadd.f32 %v1247, %v1248
    %v1250 = vsel %vm683, %v1144, 0.0
    %v1251 = vsel %vm683, %v1151, 0.0
    %v1252 = vadd.f32 %v1250, %v1251
    %v1253 = vsel %vm683, %v1158, 0.0
    %v1254 = vadd.f32 %v1252, %v1253
    %v1255 = vsel %vm683, %v1165, 0.0
    %v1256 = vadd.f32 %v1254, %v1255
    %v1257 = vsel %vm683, %v1172, 0.0
    %v1258 = vadd.f32 %v1256, %v1257
    %v1259 = vsel %vm683, %v1179, 0.0
    %v1260 = vadd.f32 %v1258, %v1259
    %v1261 = vsel %vm683, %v1186, 0.0
    %v1262 = vadd.f32 %v1260, %v1261
    %v1263 = vsel %vm683, %v1193, 0.0
    %v1264 = vadd.f32 %v1262, %v1263
    %v1265 = vsel %vm683, %v1200, 0.0
    %v1266 = vadd.f32 %v1264, %v1265
    %v1267 = vsel %vm683, %v1207, 0.0
    %v1268 = vadd.f32 %v1266, %v1267
    %v1269 = vsel %vm683, %v1214, 0.0
    %v1270 = vadd.f32 %v1268, %v1269
    %v1271 = vsel %vm683, %v1221, 0.0
    %v1272 = vadd.f32 %v1270, %v1271
    %v1273 = vsel %vm683, %v1228, 0.0
    %v1274 = vadd.f32 %v1272, %v1273
    %v1275 = vsel %vm683, %v1235, 0.0
    %v1276 = vadd.f32 %v1274, %v1275
    %v1277 = vsel %vm683, %v1242, 0.0
    %v1278 = vadd.f32 %v1276, %v1277
    %v1279 = vsel %vm683, %v1249, 0.0
    %v1280 = vadd.f32 %v1278, %v1279
    %v1281 = vrot.slane %v1280, 4
    %v1282 = vadd.f32 %v1280, %v1281
    %v1283 = vrot.slane %v1282, 2
    %v1284 = vadd.f32 %v1282, %v1283
    %v1285 = vrot.slane %v1284, 1
    %v1286 = vadd.f32 %v1284, %v1285
    %p1287 = scmp.eq.s32.totalorder 0, 0
    // Predicated region
    $region14: #{tpu_custom_call.1} parent=1 // pred_check
      %p1288 = pneg %p1287
    $region15: #{tpu_custom_call.1} parent=1 // pred_check_branch
      %1290 = sbr.rel (%p1288) target = $region17
    $region16: #{tpu_custom_call.1} parent=1 // pred_region
      %vm1291 = vcmask 57344
      %1292 = vst.msk [vmem:[#allocation2] sm:$0x1] %vm1291, 0.0
      %1293 = vst.msk [vmem:[#allocation4] sm:$0x1] %vm1291, 0.0
    $region17: #{tpu_custom_call.1} parent=1 // pred_fallthru
      _
    %v1294 = vld [vmem:[#allocation2] sm:$0x1]
    %v1295 = vadd.f32 %v1294, %v1073
    %vm1296 = vcmask 57344
    %1297 = vst.msk [vmem:[#allocation2] sm:$0x1] %vm1296, %v1295
    %v1298 = vld [vmem:[#allocation4] sm:$0x1]
    %v1299 = vadd.f32 %v1298, %v1286
    %1300 = vst.msk [vmem:[#allocation4] sm:$0x1] %vm1296, %v1299
    // Predicated region
    $region18: #{tpu_custom_call.1} parent=1 // pred_check
      _
    $region19: #{tpu_custom_call.1} parent=1 // pred_check_branch
      %1302 = sbr.rel (0) target = $region21
    $region20: #{tpu_custom_call.1} parent=1 // pred_region
      _
    $region21: #{tpu_custom_call.1} parent=1 // pred_fallthru
      _
    // Predicated region
    $region22: #{tpu_custom_call.1} parent=1 // pred_check
      _
    $region23: #{tpu_custom_call.1} parent=1 // pred_check_branch
      %1304 = sbr.rel (0) target = $region25
    $region24: #{tpu_custom_call.1} parent=1 // pred_region
      %1306 = vsyncadd [#allocation3], 0
      %s1308 = sshll.u32 [#allocation2], 4
      %s1309 = int_to_ptr.vmem [resolvable:$true] %s1308
      %s1310 = sshll.u32 %s4, 4
      %s1311 = int_to_ptr.hbm [resolvable:$true] %s1310
      %1313 = dma.vmem_to_hbm [thread:$0]  %s1309, 16, %s1311, [#allocation3]
    $region25: #{tpu_custom_call.1} parent=1 // pred_fallthru
      _
    // Predicated region
    $region26: #{tpu_custom_call.1} parent=1 // pred_check
      _
    $region27: #{tpu_custom_call.1} parent=1 // pred_check_branch
      %1315 = sbr.rel (0) target = $region29
    $region28: #{tpu_custom_call.1} parent=1 // pred_region
      %1317 = vsyncadd [#allocation5], 0
      %s1319 = sshll.u32 [#allocation4], 4
      %s1320 = int_to_ptr.vmem [resolvable:$true] %s1319
      %s1321 = sshll.u32 %s5, 4
      %s1322 = int_to_ptr.hbm [resolvable:$true] %s1321
      %1324 = dma.vmem_to_hbm [thread:$0]  %s1320, 16, %s1322, [#allocation5]
    $region29: #{tpu_custom_call.1} parent=1 // pred_fallthru
      _
    // Predicated region
    $region30: #{tpu_custom_call.1} parent=1 // pred_check
      _
    $region31: #{tpu_custom_call.1} parent=1 // pred_check_branch
      %1326 = sbr.rel (0) target = $region33
    $region32: #{tpu_custom_call.1} parent=1 // pred_region
      _
    $region33: #{tpu_custom_call.1} parent=1 // pred_fallthru
      _
    // Predicated region
    $region34: #{tpu_custom_call.1} parent=1 // pred_check
      _
    $region35: #{tpu_custom_call.1} parent=1 // pred_check_branch
      %1328 = sbr.rel (0) target = $region37
    $region36: #{tpu_custom_call.1} parent=1 // pred_region
      %1330 = dma.done [#allocation3], 16
    $region37: #{tpu_custom_call.1} parent=1 // pred_fallthru
      _
    // Predicated region
    $region38: #{tpu_custom_call.1} parent=1 // pred_check
      _
    $region39: #{tpu_custom_call.1} parent=1 // pred_check_branch
      %1332 = sbr.rel (0) target = $region41
    $region40: #{tpu_custom_call.1} parent=1 // pred_region
      %1334 = dma.done [#allocation5], 16
    $region41: #{tpu_custom_call.1} parent=1 // pred_fallthru
      _
    %1335 = vsyncpa [#allocation3], 1
    %1336 = vsyncpa [#allocation5], 1

</llo_original>
